<compile_context>
chip_gen: v5e
topology: v5e:2x2
jax: 0.10.0
libtpu: 0.0.40
codegen_flags: <defaults>
</compile_context>

<pallas_src>
import functools

import numpy as np

import jax
import jax.numpy as jnp
from jax import lax
from jax.experimental import pallas as pl
from jax.experimental.pallas import tpu as pltpu

LANES = 128   # vreg lane width
CHUNK = 64    # rows per register-resident chunk (8 vregs of f32 per operand)


def _generator_kernel(c_ref, d_ref, b2_ref, x_ref, o_ref, *, hidden, n_pos, chunk):
    """out = sum_j w2_j * relu(x*w1_j + b1_j) + b2, as unrolled VPU ops.

    c_ref[j] = w2_j*w1_j, d_ref[j] = w2_j*b1_j, with the first `n_pos` units
    having w2_j >= 0 (use max) and the rest w2_j < 0 (use min).
    """
    # Hoist all scalar (SMEM) reads out of the row-chunk loop.
    c = [c_ref[j] for j in range(hidden)]
    d = [d_ref[j] for j in range(hidden)]
    b2 = b2_ref[0]

    def compute(x):
        x = x.astype(jnp.float32)
        # Unit 0 also absorbs the accumulator init and the +b2 pass.
        v = x * c[0] + d[0]
        acc = (jnp.maximum(v, 0.0) if n_pos > 0 else jnp.minimum(v, 0.0)) + b2
        for j in range(1, hidden):
            v = x * c[j] + d[j]
            acc = acc + (jnp.maximum(v, 0.0) if j < n_pos else jnp.minimum(v, 0.0))
        return acc

    n_chunks = x_ref.shape[0] // chunk
    if n_chunks == 1:
        # Tiny tile: purely static indexing.
        o_ref[...] = compute(x_ref[...]).astype(o_ref.dtype)
    else:
        def body(ci, carry):
            r0 = pl.multiple_of(ci * chunk, chunk)
            acc = compute(x_ref[pl.ds(r0, chunk), :])
            o_ref[pl.ds(r0, chunk), :] = acc.astype(o_ref.dtype)
            return carry

        lax.fori_loop(0, n_chunks, body, 0, unroll=True)


def _pick_tiles(rows):
    """Choose (tile_rows, chunk) for a (rows, 128) lane-dense slab."""
    if rows <= 8:
        return rows, rows                       # block rows == full array rows
    target = min(1024, pl.cdiv(rows, 2))        # >=2 grid steps helps v7x's 2 TCs
    if target >= CHUNK:
        tile = (target // CHUNK) * CHUNK        # multiple of CHUNK (and of 8)
        return tile, CHUNK
    tile = ((target + 7) // 8) * 8              # small, sublane-aligned tile
    return tile, tile


def prepare_params(w1, b1, w2, b2):
    """One-time host-side preprocessing (uses concrete weight signs; not jit-able)."""
    w1 = np.asarray(jax.device_get(w1), np.float32).reshape(-1)
    b1 = np.asarray(jax.device_get(b1), np.float32).reshape(-1)
    w2 = np.asarray(jax.device_get(w2), np.float32).reshape(-1)
    b2 = np.asarray(jax.device_get(b2), np.float32).reshape(-1)
    order = np.argsort(w2 < 0, kind="stable")   # units with w2 >= 0 first
    n_pos = int(np.sum(w2 >= 0))
    c = (w2 * w1)[order]
    d = (w2 * b1)[order]
    return jnp.asarray(c), jnp.asarray(d), jnp.asarray(b2), n_pos


def generator_apply(x, c, d, b2, n_pos):
    """Equivalent to relu(x @ w1 + b1) @ w2 + b2 for x of shape [B, 1]."""
    B = x.shape[0]
    hidden = int(c.shape[0])
    dtype = x.dtype

    # Lane-dense layout: map the batch onto (R, 128).
    R = pl.cdiv(B, LANES)
    padded = R * LANES
    flat = x.reshape(-1)
    if padded != B:                       # only copy when B % 128 != 0
        flat = jnp.pad(flat, (0, padded - B))
    x2d = flat.reshape(R, LANES)          # metadata-only when no pad was needed

    tile_rows, chunk = _pick_tiles(R)
    grid = (pl.cdiv(R, tile_rows),)       # partial last block handled by Pallas

    kernel = functools.partial(_generator_kernel, hidden=hidden,
                               n_pos=n_pos, chunk=chunk)
    smem = pl.BlockSpec(memory_space=pltpu.MemorySpace.SMEM)

    out2d = pl.pallas_call(
        kernel,
        out_shape=jax.ShapeDtypeStruct((R, LANES), dtype),
        grid=grid,
        in_specs=[
            smem,                                             # c   (hidden,)
            smem,                                             # d   (hidden,)
            smem,                                             # b2  (1,)
            pl.BlockSpec((tile_rows, LANES), lambda i: (i, 0)),
        ],
        out_specs=pl.BlockSpec((tile_rows, LANES), lambda i: (i, 0)),
        compiler_params=pltpu.CompilerParams(
            dimension_semantics=("parallel",),
        ),
        cost_estimate=pl.CostEstimate(
            flops=4 * hidden * padded,
            transcendentals=0,
            bytes_accessed=8 * padded,
        ),
    )(c, d, b2, x2d)

    if padded == B:
        return out2d.reshape(B, 1)                 # metadata-only
    return out2d.reshape(-1)[:B].reshape(B, 1)     # slice only when padded


def generator_forward(x, w1, b1, w2, b2):
    return generator_apply(x, *prepare_params(w1, b1, w2, b2))


def init_params(key, in_f=1, hidden=16, out_f=1, dtype=jnp.float32):
    # Deterministic init mimicking nn.Linear's uniform(-1/sqrt(fan_in), 1/sqrt(fan_in)).
    k1, k2, k3, k4 = jax.random.split(key, 4)
    bound1 = 1.0 / jnp.sqrt(in_f)
    bound2 = 1.0 / jnp.sqrt(hidden)
    # Stored as (in_features, out_features) = transpose of PyTorch's (out, in).
    w1 = jax.random.uniform(k1, (in_f, hidden), dtype, -bound1, bound1)
    b1 = jax.random.uniform(k2, (1, hidden), dtype, -bound1, bound1)
    w2 = jax.random.uniform(k3, (hidden, out_f), dtype, -bound2, bound2)
    b2 = jax.random.uniform(k4, (1, out_f), dtype, -bound2, bound2)
    return w1, b1, w2, b2


def _reference(x, w1, b1, w2, b2):
    return jnp.maximum(x @ w1 + b1, 0.0) @ w2 + b2


if __name__ == "__main__":
    key = jax.random.PRNGKey(0)
    kx1, kx2, kx3, kp = jax.random.split(key, 4)

    w1, b1, w2, b2 = init_params(kp)
    params = prepare_params(w1, b1, w2, b2)

    # B=8   : tiny demo batch matching the module's [batch, 1] input
    # B=300 : exercises lane padding (B % 128 != 0)
    # B=32768: exercises the multi-step grid and the chunked inner loop
    for kx, B in ((kx1, 8), (kx2, 300), (kx3, 32768)):
        x = jax.random.normal(kx, (B, 1), jnp.float32)
        out = jax.block_until_ready(generator_apply(x, *params))
        ref = _reference(x, w1, b1, w2, b2)
        assert out.shape == (B, 1), f"bad shape at B={B}"
        assert jnp.allclose(out, ref, atol=1e-5, rtol=1e-5), f"mismatch vs reference (B={B})"

    print("KERNEL_OK")
</pallas_src>

<mosaic_0001>
module attributes {stable_mosaic.version = 11 : i64} {
  func.func @_generator_kernel(%arg0: i32, %arg1: memref<16xf32, #tpu.memory_space<smem>>, %arg2: memref<16xf32, #tpu.memory_space<smem>>, %arg3: memref<1xf32, #tpu.memory_space<smem>>, %arg4: memref<1x128xf32, #tpu.memory_space<vmem>>, %arg5: memref<1x128xf32, #tpu.memory_space<vmem>>) attributes {dimension_semantics = [#tpu.dimension_semantics<parallel>], iteration_bounds = array<i64: 1>, scalar_prefetch = 0 : i64, scratch_operands = 0 : i64, tpu.core_type = #tpu.core_type<tc>, window_params = [{transform_indices = @transform_0, window_bounds = array<i64: 16>}, {transform_indices = @transform_1, window_bounds = array<i64: 16>}, {transform_indices = @transform_2, window_bounds = array<i64: 1>}, {transform_indices = @transform_3, window_bounds = array<i64: 1, 128>}, {transform_indices = @transform_4, window_bounds = array<i64: 1, 128>}]} {
    %c0 = arith.constant 0 : index
    %0 = memref.load %arg1[%c0] : memref<16xf32, #tpu.memory_space<smem>>
    %c1 = arith.constant 1 : index
    %1 = memref.load %arg1[%c1] : memref<16xf32, #tpu.memory_space<smem>>
    %c2 = arith.constant 2 : index
    %2 = memref.load %arg1[%c2] : memref<16xf32, #tpu.memory_space<smem>>
    %c3 = arith.constant 3 : index
    %3 = memref.load %arg1[%c3] : memref<16xf32, #tpu.memory_space<smem>>
    %c4 = arith.constant 4 : index
    %4 = memref.load %arg1[%c4] : memref<16xf32, #tpu.memory_space<smem>>
    %c5 = arith.constant 5 : index
    %5 = memref.load %arg1[%c5] : memref<16xf32, #tpu.memory_space<smem>>
    %c6 = arith.constant 6 : index
    %6 = memref.load %arg1[%c6] : memref<16xf32, #tpu.memory_space<smem>>
    %c7 = arith.constant 7 : index
    %7 = memref.load %arg1[%c7] : memref<16xf32, #tpu.memory_space<smem>>
    %c8 = arith.constant 8 : index
    %8 = memref.load %arg1[%c8] : memref<16xf32, #tpu.memory_space<smem>>
    %c9 = arith.constant 9 : index
    %9 = memref.load %arg1[%c9] : memref<16xf32, #tpu.memory_space<smem>>
    %c10 = arith.constant 10 : index
    %10 = memref.load %arg1[%c10] : memref<16xf32, #tpu.memory_space<smem>>
    %c11 = arith.constant 11 : index
    %11 = memref.load %arg1[%c11] : memref<16xf32, #tpu.memory_space<smem>>
    %c12 = arith.constant 12 : index
    %12 = memref.load %arg1[%c12] : memref<16xf32, #tpu.memory_space<smem>>
    %c13 = arith.constant 13 : index
    %13 = memref.load %arg1[%c13] : memref<16xf32, #tpu.memory_space<smem>>
    %c14 = arith.constant 14 : index
    %14 = memref.load %arg1[%c14] : memref<16xf32, #tpu.memory_space<smem>>
    %c15 = arith.constant 15 : index
    %15 = memref.load %arg1[%c15] : memref<16xf32, #tpu.memory_space<smem>>
    %c0_0 = arith.constant 0 : index
    %16 = memref.load %arg2[%c0_0] : memref<16xf32, #tpu.memory_space<smem>>
    %c1_1 = arith.constant 1 : index
    %17 = memref.load %arg2[%c1_1] : memref<16xf32, #tpu.memory_space<smem>>
    %c2_2 = arith.constant 2 : index
    %18 = memref.load %arg2[%c2_2] : memref<16xf32, #tpu.memory_space<smem>>
    %c3_3 = arith.constant 3 : index
    %19 = memref.load %arg2[%c3_3] : memref<16xf32, #tpu.memory_space<smem>>
    %c4_4 = arith.constant 4 : index
    %20 = memref.load %arg2[%c4_4] : memref<16xf32, #tpu.memory_space<smem>>
    %c5_5 = arith.constant 5 : index
    %21 = memref.load %arg2[%c5_5] : memref<16xf32, #tpu.memory_space<smem>>
    %c6_6 = arith.constant 6 : index
    %22 = memref.load %arg2[%c6_6] : memref<16xf32, #tpu.memory_space<smem>>
    %c7_7 = arith.constant 7 : index
    %23 = memref.load %arg2[%c7_7] : memref<16xf32, #tpu.memory_space<smem>>
    %c8_8 = arith.constant 8 : index
    %24 = memref.load %arg2[%c8_8] : memref<16xf32, #tpu.memory_space<smem>>
    %c9_9 = arith.constant 9 : index
    %25 = memref.load %arg2[%c9_9] : memref<16xf32, #tpu.memory_space<smem>>
    %c10_10 = arith.constant 10 : index
    %26 = memref.load %arg2[%c10_10] : memref<16xf32, #tpu.memory_space<smem>>
    %c11_11 = arith.constant 11 : index
    %27 = memref.load %arg2[%c11_11] : memref<16xf32, #tpu.memory_space<smem>>
    %c12_12 = arith.constant 12 : index
    %28 = memref.load %arg2[%c12_12] : memref<16xf32, #tpu.memory_space<smem>>
    %c13_13 = arith.constant 13 : index
    %29 = memref.load %arg2[%c13_13] : memref<16xf32, #tpu.memory_space<smem>>
    %c14_14 = arith.constant 14 : index
    %30 = memref.load %arg2[%c14_14] : memref<16xf32, #tpu.memory_space<smem>>
    %c15_15 = arith.constant 15 : index
    %31 = memref.load %arg2[%c15_15] : memref<16xf32, #tpu.memory_space<smem>>
    %c0_16 = arith.constant 0 : index
    %32 = memref.load %arg3[%c0_16] : memref<1xf32, #tpu.memory_space<smem>>
    %c0_17 = arith.constant 0 : index
    %c0_18 = arith.constant 0 : index
    %33 = vector.load %arg4[%c0_17, %c0_18] : memref<1x128xf32, #tpu.memory_space<vmem>>, vector<1x128xf32>
    %34 = vector.broadcast %0 : f32 to vector<1x128xf32>
    %35 = arith.mulf %33, %34 : vector<1x128xf32>
    %36 = vector.broadcast %16 : f32 to vector<1x128xf32>
    %37 = arith.addf %35, %36 : vector<1x128xf32>
    %cst = arith.constant 0.000000e+00 : f32
    %38 = vector.broadcast %cst : f32 to vector<1x128xf32>
    %39 = arith.maximumf %37, %38 : vector<1x128xf32>
    %40 = vector.broadcast %32 : f32 to vector<1x128xf32>
    %41 = arith.addf %39, %40 : vector<1x128xf32>
    %42 = vector.broadcast %1 : f32 to vector<1x128xf32>
    %43 = arith.mulf %33, %42 : vector<1x128xf32>
    %44 = vector.broadcast %17 : f32 to vector<1x128xf32>
    %45 = arith.addf %43, %44 : vector<1x128xf32>
    %cst_19 = arith.constant 0.000000e+00 : f32
    %46 = vector.broadcast %cst_19 : f32 to vector<1x128xf32>
    %47 = arith.maximumf %45, %46 : vector<1x128xf32>
    %48 = arith.addf %41, %47 : vector<1x128xf32>
    %49 = vector.broadcast %2 : f32 to vector<1x128xf32>
    %50 = arith.mulf %33, %49 : vector<1x128xf32>
    %51 = vector.broadcast %18 : f32 to vector<1x128xf32>
    %52 = arith.addf %50, %51 : vector<1x128xf32>
    %cst_20 = arith.constant 0.000000e+00 : f32
    %53 = vector.broadcast %cst_20 : f32 to vector<1x128xf32>
    %54 = arith.maximumf %52, %53 : vector<1x128xf32>
    %55 = arith.addf %48, %54 : vector<1x128xf32>
    %56 = vector.broadcast %3 : f32 to vector<1x128xf32>
    %57 = arith.mulf %33, %56 : vector<1x128xf32>
    %58 = vector.broadcast %19 : f32 to vector<1x128xf32>
    %59 = arith.addf %57, %58 : vector<1x128xf32>
    %cst_21 = arith.constant 0.000000e+00 : f32
    %60 = vector.broadcast %cst_21 : f32 to vector<1x128xf32>
    %61 = arith.maximumf %59, %60 : vector<1x128xf32>
    %62 = arith.addf %55, %61 : vector<1x128xf32>
    %63 = vector.broadcast %4 : f32 to vector<1x128xf32>
    %64 = arith.mulf %33, %63 : vector<1x128xf32>
    %65 = vector.broadcast %20 : f32 to vector<1x128xf32>
    %66 = arith.addf %64, %65 : vector<1x128xf32>
    %cst_22 = arith.constant 0.000000e+00 : f32
    %67 = vector.broadcast %cst_22 : f32 to vector<1x128xf32>
    %68 = arith.maximumf %66, %67 : vector<1x128xf32>
    %69 = arith.addf %62, %68 : vector<1x128xf32>
    %70 = vector.broadcast %5 : f32 to vector<1x128xf32>
    %71 = arith.mulf %33, %70 : vector<1x128xf32>
    %72 = vector.broadcast %21 : f32 to vector<1x128xf32>
    %73 = arith.addf %71, %72 : vector<1x128xf32>
    %cst_23 = arith.constant 0.000000e+00 : f32
    %74 = vector.broadcast %cst_23 : f32 to vector<1x128xf32>
    %75 = arith.maximumf %73, %74 : vector<1x128xf32>
    %76 = arith.addf %69, %75 : vector<1x128xf32>
    %77 = vector.broadcast %6 : f32 to vector<1x128xf32>
    %78 = arith.mulf %33, %77 : vector<1x128xf32>
    %79 = vector.broadcast %22 : f32 to vector<1x128xf32>
    %80 = arith.addf %78, %79 : vector<1x128xf32>
    %cst_24 = arith.constant 0.000000e+00 : f32
    %81 = vector.broadcast %cst_24 : f32 to vector<1x128xf32>
    %82 = arith.maximumf %80, %81 : vector<1x128xf32>
    %83 = arith.addf %76, %82 : vector<1x128xf32>
    %84 = vector.broadcast %7 : f32 to vector<1x128xf32>
    %85 = arith.mulf %33, %84 : vector<1x128xf32>
    %86 = vector.broadcast %23 : f32 to vector<1x128xf32>
    %87 = arith.addf %85, %86 : vector<1x128xf32>
    %cst_25 = arith.constant 0.000000e+00 : f32
    %88 = vector.broadcast %cst_25 : f32 to vector<1x128xf32>
    %89 = arith.maximumf %87, %88 : vector<1x128xf32>
    %90 = arith.addf %83, %89 : vector<1x128xf32>
    %91 = vector.broadcast %8 : f32 to vector<1x128xf32>
    %92 = arith.mulf %33, %91 : vector<1x128xf32>
    %93 = vector.broadcast %24 : f32 to vector<1x128xf32>
    %94 = arith.addf %92, %93 : vector<1x128xf32>
    %cst_26 = arith.constant 0.000000e+00 : f32
    %95 = vector.broadcast %cst_26 : f32 to vector<1x128xf32>
    %96 = arith.maximumf %94, %95 : vector<1x128xf32>
    %97 = arith.addf %90, %96 : vector<1x128xf32>
    %98 = vector.broadcast %9 : f32 to vector<1x128xf32>
    %99 = arith.mulf %33, %98 : vector<1x128xf32>
    %100 = vector.broadcast %25 : f32 to vector<1x128xf32>
    %101 = arith.addf %99, %100 : vector<1x128xf32>
    %cst_27 = arith.constant 0.000000e+00 : f32
    %102 = vector.broadcast %cst_27 : f32 to vector<1x128xf32>
    %103 = arith.minimumf %101, %102 : vector<1x128xf32>
    %104 = arith.addf %97, %103 : vector<1x128xf32>
    %105 = vector.broadcast %10 : f32 to vector<1x128xf32>
    %106 = arith.mulf %33, %105 : vector<1x128xf32>
    %107 = vector.broadcast %26 : f32 to vector<1x128xf32>
    %108 = arith.addf %106, %107 : vector<1x128xf32>
    %cst_28 = arith.constant 0.000000e+00 : f32
    %109 = vector.broadcast %cst_28 : f32 to vector<1x128xf32>
    %110 = arith.minimumf %108, %109 : vector<1x128xf32>
    %111 = arith.addf %104, %110 : vector<1x128xf32>
    %112 = vector.broadcast %11 : f32 to vector<1x128xf32>
    %113 = arith.mulf %33, %112 : vector<1x128xf32>
    %114 = vector.broadcast %27 : f32 to vector<1x128xf32>
    %115 = arith.addf %113, %114 : vector<1x128xf32>
    %cst_29 = arith.constant 0.000000e+00 : f32
    %116 = vector.broadcast %cst_29 : f32 to vector<1x128xf32>
    %117 = arith.minimumf %115, %116 : vector<1x128xf32>
    %118 = arith.addf %111, %117 : vector<1x128xf32>
    %119 = vector.broadcast %12 : f32 to vector<1x128xf32>
    %120 = arith.mulf %33, %119 : vector<1x128xf32>
    %121 = vector.broadcast %28 : f32 to vector<1x128xf32>
    %122 = arith.addf %120, %121 : vector<1x128xf32>
    %cst_30 = arith.constant 0.000000e+00 : f32
    %123 = vector.broadcast %cst_30 : f32 to vector<1x128xf32>
    %124 = arith.minimumf %122, %123 : vector<1x128xf32>
    %125 = arith.addf %118, %124 : vector<1x128xf32>
    %126 = vector.broadcast %13 : f32 to vector<1x128xf32>
    %127 = arith.mulf %33, %126 : vector<1x128xf32>
    %128 = vector.broadcast %29 : f32 to vector<1x128xf32>
    %129 = arith.addf %127, %128 : vector<1x128xf32>
    %cst_31 = arith.constant 0.000000e+00 : f32
    %130 = vector.broadcast %cst_31 : f32 to vector<1x128xf32>
    %131 = arith.minimumf %129, %130 : vector<1x128xf32>
    %132 = arith.addf %125, %131 : vector<1x128xf32>
    %133 = vector.broadcast %14 : f32 to vector<1x128xf32>
    %134 = arith.mulf %33, %133 : vector<1x128xf32>
    %135 = vector.broadcast %30 : f32 to vector<1x128xf32>
    %136 = arith.addf %134, %135 : vector<1x128xf32>
    %cst_32 = arith.constant 0.000000e+00 : f32
    %137 = vector.broadcast %cst_32 : f32 to vector<1x128xf32>
    %138 = arith.minimumf %136, %137 : vector<1x128xf32>
    %139 = arith.addf %132, %138 : vector<1x128xf32>
    %140 = vector.broadcast %15 : f32 to vector<1x128xf32>
    %141 = arith.mulf %33, %140 : vector<1x128xf32>
    %142 = vector.broadcast %31 : f32 to vector<1x128xf32>
    %143 = arith.addf %141, %142 : vector<1x128xf32>
    %cst_33 = arith.constant 0.000000e+00 : f32
    %144 = vector.broadcast %cst_33 : f32 to vector<1x128xf32>
    %145 = arith.minimumf %143, %144 : vector<1x128xf32>
    %146 = arith.addf %139, %145 : vector<1x128xf32>
    %c0_34 = arith.constant 0 : index
    %c0_35 = arith.constant 0 : index
    %147 = vector.load %arg5[%c0_34, %c0_35] : memref<1x128xf32, #tpu.memory_space<vmem>>, vector<1x128xf32>
    tpu.vector_store %arg5[%c0_34, %c0_35], %146 {strides = array<i32>} : memref<1x128xf32, #tpu.memory_space<vmem>>, vector<1x128xf32>,
    return
  }
  func.func @transform_0(%arg0: i32) -> i32 {
    %c0_i32 = arith.constant 0 : i32
    %c0_i32_0 = arith.constant 0 : i32
    return %c0_i32 : i32
  }
  func.func @transform_1(%arg0: i32) -> i32 {
    %c0_i32 = arith.constant 0 : i32
    %c0_i32_0 = arith.constant 0 : i32
    return %c0_i32 : i32
  }
  func.func @transform_2(%arg0: i32) -> i32 {
    %c0_i32 = arith.constant 0 : i32
    %c0_i32_0 = arith.constant 0 : i32
    return %c0_i32 : i32
  }
  func.func @transform_3(%arg0: i32) -> (i32, i32) {
    %c0_i32 = arith.constant 0 : i32
    %c0_i32_0 = arith.constant 0 : i32
    return %arg0, %c0_i32 : i32, i32
  }
  func.func @transform_4(%arg0: i32) -> (i32, i32) {
    %c0_i32 = arith.constant 0 : i32
    %c0_i32_0 = arith.constant 0 : i32
    return %arg0, %c0_i32 : i32, i32
  }
}

</mosaic_0001>

<llo_original>
// kernel: tpu_custom_call.1
$region0: #{tpu_custom_call.1}
  #allocation0 [shape = 'u32[]', space=smem, size = 0x4, offset = 0x4, fixed_abs, tag = 'smem constant byte address 0x4 - core index']
  #allocation1 [shape = 'u32[72,128]{1,0:T(1,128)}', space=vmem, size = 0x9000, scoped, tag = 'internal scratch']
  #allocation2 [shape = 'f32[1]{0:T(128)S(6)}', space=smem, size = 0x200, scoped, tag = 'scoped memory for tpu_custom_call.1']
  %s0 = inlined_call_operand.vmem [shape: f32[16], index: 0, kind: input, shape index: {}]
  %s1 = inlined_call_operand.vmem [shape: f32[16], index: 1, kind: input, shape index: {}]
  %s2 = inlined_call_operand.<no memory space> [shape: f32[1], index: 2, kind: input, shape index: {}]
  %s3 = inlined_call_operand.vmem [shape: f32[1,128], index: 3, kind: input, shape index: {}]
  %s4 = inlined_call_operand.hbm [shape: f32[1,128], index: 4, kind: output, shape index: {}]
  %s5 = sld [smem:[#allocation0]]
  $region34: #{tpu_custom_call.1} parent=0
    _
  %s7 = ssub.s32 1, %s5
  %s8 = scalar_select 0, %s7, %s5
  %9 = sst [smem:[#allocation2]] %s2
  $region1: #{tpu_custom_call.1} parent=0
    #allocation3 [shape = 'u8[512]{0}', space=smem, size = 0x200, scoped, tag = 'input window, operand 0, single buffered']
    #allocation4 [shape = 's32[1]{0}', space=sflag, size = 0x4, scoped, tag = 'scoped memory for tpu_custom_call.1']
    #allocation5 [shape = 's32[1]{0}', space=sflag, size = 0x4, scoped, tag = 'scoped memory for tpu_custom_call.1']
    #allocation6 [shape = 'u8[512]{0}', space=smem, size = 0x200, scoped, tag = 'input window, operand 1, single buffered']
    #allocation7 [shape = 's32[1]{0}', space=sflag, size = 0x4, scoped, tag = 'scoped memory for tpu_custom_call.1']
    #allocation8 [shape = 'u8[512]{0}', space=vmem, size = 0x400, scoped, tag = 'output window, operand 0, single buffered']
    %10 = vsyncpa [#allocation5], 0
    %11 = vsyncpa [#allocation7], 0
    %12 = vsyncpa [#allocation4], 0
    // Predicated region
    $region2: #{tpu_custom_call.1} parent=1 // pred_check
      _
    $region3: #{tpu_custom_call.1} parent=1 // pred_check_branch
      %14 = sbr.rel (0) target = $region5
    $region4: #{tpu_custom_call.1} parent=1 // pred_region
      %16 = vsyncadd [#allocation5], 0
      %s18 = sshll.u32 %s0, 4
      %s19 = int_to_ptr.vmem [resolvable:$true] %s18
      %21 = dma.vmem_to_smem %s19, 16, [#allocation3], [#allocation5]
    $region5: #{tpu_custom_call.1} parent=1 // pred_fallthru
      _
    // Predicated region
    $region6: #{tpu_custom_call.1} parent=1 // pred_check
      _
    $region7: #{tpu_custom_call.1} parent=1 // pred_check_branch
      %23 = sbr.rel (0) target = $region9
    $region8: #{tpu_custom_call.1} parent=1 // pred_region
      %25 = vsyncadd [#allocation7], 0
      %s27 = sshll.u32 %s1, 4
      %s28 = int_to_ptr.vmem [resolvable:$true] %s27
      %30 = dma.vmem_to_smem %s28, 16, [#allocation6], [#allocation7]
    $region9: #{tpu_custom_call.1} parent=1 // pred_fallthru
      _
    // Predicated region
    $region10: #{tpu_custom_call.1} parent=1 // pred_check
      _
    $region11: #{tpu_custom_call.1} parent=1 // pred_check_branch
      %32 = sbr.rel (0) target = $region13
    $region12: #{tpu_custom_call.1} parent=1 // pred_region
      _
    $region13: #{tpu_custom_call.1} parent=1 // pred_fallthru
      _
    // Predicated region
    $region14: #{tpu_custom_call.1} parent=1 // pred_check
      _
    $region15: #{tpu_custom_call.1} parent=1 // pred_check_branch
      %34 = sbr.rel (0) target = $region17
    $region16: #{tpu_custom_call.1} parent=1 // pred_region
      _
    $region17: #{tpu_custom_call.1} parent=1 // pred_fallthru
      _
    // Predicated region
    $region18: #{tpu_custom_call.1} parent=1 // pred_check
      _
    $region19: #{tpu_custom_call.1} parent=1 // pred_check_branch
      %36 = sbr.rel (0) target = $region21
    $region20: #{tpu_custom_call.1} parent=1 // pred_region
      %38 = dma.done [#allocation5], 16
    $region21: #{tpu_custom_call.1} parent=1 // pred_fallthru
      _
    // Predicated region
    $region22: #{tpu_custom_call.1} parent=1 // pred_check
      _
    $region23: #{tpu_custom_call.1} parent=1 // pred_check_branch
      %40 = sbr.rel (0) target = $region25
    $region24: #{tpu_custom_call.1} parent=1 // pred_region
      %42 = dma.done [#allocation7], 16
    $region25: #{tpu_custom_call.1} parent=1 // pred_fallthru
      _
    %43 = sfence
    %s44 = sld [smem:[#allocation3]]
    %s45 = sld [smem:[#allocation3 + $0x1]]
    %s46 = sld [smem:[#allocation3 + $0x2]]
    %s47 = sld [smem:[#allocation3 + $0x3]]
    %s48 = sld [smem:[#allocation3 + $0x4]]
    %s49 = sld [smem:[#allocation3 + $0x5]]
    %s50 = sld [smem:[#allocation3 + $0x6]]
    %s51 = sld [smem:[#allocation3 + $0x7]]
    %s52 = sld [smem:[#allocation3 + $0x8]]
    %s53 = sld [smem:[#allocation3 + $0x9]]
    %s54 = sld [smem:[#allocation3 + $0xa]]
    %s55 = sld [smem:[#allocation3 + $0xb]]
    %s56 = sld [smem:[#allocation3 + $0xc]]
    %s57 = sld [smem:[#allocation3 + $0xd]]
    %s58 = sld [smem:[#allocation3 + $0xe]]
    %s59 = sld [smem:[#allocation3 + $0xf]]
    %s60 = sld [smem:[#allocation6]]
    %s61 = sld [smem:[#allocation6 + $0x1]]
    %s62 = sld [smem:[#allocation6 + $0x2]]
    %s63 = sld [smem:[#allocation6 + $0x3]]
    %s64 = sld [smem:[#allocation6 + $0x4]]
    %s65 = sld [smem:[#allocation6 + $0x5]]
    %s66 = sld [smem:[#allocation6 + $0x6]]
    %s67 = sld [smem:[#allocation6 + $0x7]]
    %s68 = sld [smem:[#allocation6 + $0x8]]
    %s69 = sld [smem:[#allocation6 + $0x9]]
    %s70 = sld [smem:[#allocation6 + $0xa]]
    %s71 = sld [smem:[#allocation6 + $0xb]]
    %s72 = sld [smem:[#allocation6 + $0xc]]
    %s73 = sld [smem:[#allocation6 + $0xd]]
    %s74 = sld [smem:[#allocation6 + $0xe]]
    %s75 = sld [smem:[#allocation6 + $0xf]]
    %s76 = sld [smem:[#allocation2]]
    %v77 = vld [vmem:[%s3] sm:$0x1]
    %v78 = vstv %s44
    %v79 = vmul.f32 %v77, %v78
    %v80 = vstv %s60
    %v81 = vadd.f32 %v79, %v80
    %v82 = vmax.f32 %v81, 0.0
    %v83 = vstv %s76
    %v84 = vadd.f32 %v82, %v83
    %v85 = vstv %s45
    %v86 = vmul.f32 %v77, %v85
    %v87 = vstv %s61
    %v88 = vadd.f32 %v86, %v87
    %v89 = vmax.f32 %v88, 0.0
    %v90 = vadd.f32 %v84, %v89
    %v91 = vstv %s46
    %v92 = vmul.f32 %v77, %v91
    %v93 = vstv %s62
    %v94 = vadd.f32 %v92, %v93
    %v95 = vmax.f32 %v94, 0.0
    %v96 = vadd.f32 %v90, %v95
    %v97 = vstv %s47
    %v98 = vmul.f32 %v77, %v97
    %v99 = vstv %s63
    %v100 = vadd.f32 %v98, %v99
    %v101 = vmax.f32 %v100, 0.0
    %v102 = vadd.f32 %v96, %v101
    %v103 = vstv %s48
    %v104 = vmul.f32 %v77, %v103
    %v105 = vstv %s64
    %v106 = vadd.f32 %v104, %v105
    %v107 = vmax.f32 %v106, 0.0
    %v108 = vadd.f32 %v102, %v107
    %v109 = vstv %s49
    %v110 = vmul.f32 %v77, %v109
    %v111 = vstv %s65
    %v112 = vadd.f32 %v110, %v111
    %v113 = vmax.f32 %v112, 0.0
    %v114 = vadd.f32 %v108, %v113
    %v115 = vstv %s50
    %v116 = vmul.f32 %v77, %v115
    %v117 = vstv %s66
    %v118 = vadd.f32 %v116, %v117
    %v119 = vmax.f32 %v118, 0.0
    %v120 = vadd.f32 %v114, %v119
    %v121 = vstv %s51
    %v122 = vmul.f32 %v77, %v121
    %v123 = vstv %s67
    %v124 = vadd.f32 %v122, %v123
    %v125 = vmax.f32 %v124, 0.0
    %v126 = vadd.f32 %v120, %v125
    %v127 = vstv %s52
    %v128 = vmul.f32 %v77, %v127
    %v129 = vstv %s68
    %v130 = vadd.f32 %v128, %v129
    %v131 = vmax.f32 %v130, 0.0
    %v132 = vadd.f32 %v126, %v131
    %v133 = vstv %s53
    %v134 = vmul.f32 %v77, %v133
    %v135 = vstv %s69
    %v136 = vadd.f32 %v134, %v135
    %v137 = vmin.f32 %v136, 0.0
    %v138 = vadd.f32 %v132, %v137
    %v139 = vstv %s54
    %v140 = vmul.f32 %v77, %v139
    %v141 = vstv %s70
    %v142 = vadd.f32 %v140, %v141
    %v143 = vmin.f32 %v142, 0.0
    %v144 = vadd.f32 %v138, %v143
    %v145 = vstv %s55
    %v146 = vmul.f32 %v77, %v145
    %v147 = vstv %s71
    %v148 = vadd.f32 %v146, %v147
    %v149 = vmin.f32 %v148, 0.0
    %v150 = vadd.f32 %v144, %v149
    %v151 = vstv %s56
    %v152 = vmul.f32 %v77, %v151
    %v153 = vstv %s72
    %v154 = vadd.f32 %v152, %v153
    %v155 = vmin.f32 %v154, 0.0
    %v156 = vadd.f32 %v150, %v155
    %v157 = vstv %s57
    %v158 = vmul.f32 %v77, %v157
    %v159 = vstv %s73
    %v160 = vadd.f32 %v158, %v159
    %v161 = vmin.f32 %v160, 0.0
    %v162 = vadd.f32 %v156, %v161
    %v163 = vstv %s58
    %v164 = vmul.f32 %v77, %v163
    %v165 = vstv %s74
    %v166 = vadd.f32 %v164, %v165
    %v167 = vmin.f32 %v166, 0.0
    %v168 = vadd.f32 %v162, %v167
    %v169 = vstv %s59
    %v170 = vmul.f32 %v77, %v169
    %v171 = vstv %s75
    %v172 = vadd.f32 %v170, %v171
    %v173 = vmin.f32 %v172, 0.0
    %v174 = vadd.f32 %v168, %v173
    %175 = vst [vmem:[#allocation8] sm:$0x1] %v174
    // Predicated region
    $region26: #{tpu_custom_call.1} parent=1 // pred_check
      _
    $region27: #{tpu_custom_call.1} parent=1 // pred_check_branch
      %177 = sbr.rel (0) target = $region29
    $region28: #{tpu_custom_call.1} parent=1 // pred_region
      %179 = vsyncadd [#allocation4], 0
      %s181 = sshll.u32 [#allocation8], 4
      %s182 = int_to_ptr.vmem [resolvable:$true] %s181
      %s183 = sshll.u32 %s4, 4
      %s184 = int_to_ptr.hbm [resolvable:$true] %s183
      %186 = dma.vmem_to_hbm [thread:$0]  %s182, 16, %s184, [#allocation4]
    $region29: #{tpu_custom_call.1} parent=1 // pred_fallthru
      _
    // Predicated region
    $region30: #{tpu_custom_call.1} parent=1 // pred_check
      _
    $region31: #{tpu_custom_call.1} parent=1 // pred_check_branch
      %188 = sbr.rel (0) target = $region33
    $region32: #{tpu_custom_call.1} parent=1 // pred_region
      %190 = dma.done [#allocation4], 16
    $region33: #{tpu_custom_call.1} parent=1 // pred_fallthru
      _
    %191 = vsyncpa [#allocation4], 1
    %192 = vsyncpa [#allocation5], 1
    %193 = vsyncpa [#allocation7], 1

</llo_original>
